<compile_context>
chip_gen: v6e
topology: v6e:2x2x1
jax: 0.10.0
libtpu: 0.0.40
codegen_flags: <defaults>
</compile_context>

<pallas_src>
import jax
import jax.numpy as jnp
from jax.experimental import pallas as pl
from jax.experimental.pallas import tpu as pltpu

_HIDDEN = 64
_MAX_ROW_TILE = 8192   # max batch columns per grid step (lane axis)
_LANE = 128


def _round_up(n, m):
    return ((n + m - 1) // m) * m


def _choose_batch_tile(batch):
    """Pick (bm, padded_b, n_steps): few big steps, even step count if > 1."""
    padded_min = _round_up(max(batch, 1), _LANE)
    n_steps = -(-padded_min // _MAX_ROW_TILE)          # ceil div
    if n_steps > 1 and n_steps % 2 == 1:
        n_steps += 1                                    # balance v7x's 2 TCs
    bm = _round_up(-(-padded_min // n_steps), _LANE)
    padded_b = bm * n_steps
    return bm, padded_b, n_steps


def _mlp_kernel(xT_ref, w1T_ref, b1_ref, w2T_ref, b2_ref, w3_ref, b3_ref,
                out_ref):
    xT = xT_ref[...]                                              # (D, BM)

    # fc1 + relu (MXU): (H, D) @ (D, BM) -> (H, BM)
    h1 = jnp.dot(w1T_ref[...], xT, preferred_element_type=jnp.float32)
    h1 = jnp.maximum(h1 + b1_ref[...], 0.0)                       # b1: (H, 1)

    # fc2 + relu (MXU): (H, H) @ (H, BM) -> (H, BM)
    h2 = jnp.dot(w2T_ref[...], h1, preferred_element_type=jnp.float32)
    h2 = jnp.maximum(h2 + b2_ref[...], 0.0)                       # b2: (H, 1)

    # fc3: (1, H) @ (H, BM) -> (1, BM).  Lane-dense output row; b3 from SMEM.
    mean_row = jnp.dot(w3_ref[...], h2, preferred_element_type=jnp.float32)
    out_ref[...] = (mean_row + b3_ref[0, 0]).astype(out_ref.dtype)


def _forward_impl(x, params):
    """Pallas equivalent of NeuralNetReg.forward.

    x: (B, input_size) float32
    returns: (action_mean (B, 1), action_logstd (B, 1))
    """
    w1, b1, w2, b2, w3, b3, logstd = params
    B, D = x.shape
    H = _HIDDEN

    bm, padded_b, n_steps = _choose_batch_tile(B)

    xT = x.T                                           # (D, B) — batch on lanes
    if padded_b != B:
        xT = jnp.pad(xT, ((0, 0), (0, padded_b - B)))

    w1T = w1.T                                         # (H, D)
    w2T = w2.T                                         # (H, H)
    b1c = jnp.reshape(b1, (H, 1))
    b2c = jnp.reshape(b2, (H, 1))
    w3r = jnp.reshape(w3, (1, H))
    b3s = jnp.reshape(b3, (1, 1))

    const = lambda i: (0, 0)                           # weights stay resident

    flops = 2 * padded_b * (D * H + H * H + H)
    bytes_accessed = 4 * (
        padded_b * D                                   # x^T
        + H * D + H + H * H + H + H + 1                # params
        + padded_b                                     # mean row out
    )

    mean_row = pl.pallas_call(
        _mlp_kernel,
        out_shape=jax.ShapeDtypeStruct((1, padded_b), jnp.float32),
        grid=(n_steps,),
        in_specs=[
            pl.BlockSpec((D, bm), lambda i: (0, i)),             # x^T tile
            pl.BlockSpec((H, D), const),                         # w1^T
            pl.BlockSpec((H, 1), const),                         # b1 column
            pl.BlockSpec((H, H), const),                         # w2^T
            pl.BlockSpec((H, 1), const),                         # b2 column
            pl.BlockSpec((1, H), const),                         # w3 row
            pl.BlockSpec(memory_space=pltpu.MemorySpace.SMEM),   # b3 scalar
        ],
        out_specs=pl.BlockSpec((1, bm), lambda i: (0, i)),       # lane-dense
        compiler_params=pltpu.CompilerParams(
            dimension_semantics=("parallel",)),
        cost_estimate=pl.CostEstimate(
            flops=flops, transcendentals=0, bytes_accessed=bytes_accessed),
    )(xT, w1T, b1c, w2T, b2c, w3r, b3s)

    mean = jnp.reshape(mean_row, (padded_b, 1))[:B]
    # action_logstd = logstd.expand_as(action_mean): pure scalar broadcast,
    # fused into the same jit as the pallas_call.
    logstd_out = jnp.broadcast_to(logstd, mean.shape).astype(mean.dtype)
    return mean, logstd_out


neural_net_reg_forward = jax.jit(_forward_impl)


def init_params(key, input_size):
    """Deterministic parameter init (shapes match the nn.Linear layers)."""
    k1, k2, k3, k4, k5, k6 = jax.random.split(key, 6)

    def linear(kw, kb, fan_in, fan_out):
        bound = 1.0 / jnp.sqrt(jnp.float32(fan_in))
        w = jax.random.uniform(kw, (fan_in, fan_out), jnp.float32, -bound, bound)
        b = jax.random.uniform(kb, (1, fan_out), jnp.float32, -bound, bound)
        return w, b

    w1, b1 = linear(k1, k2, input_size, _HIDDEN)
    w2, b2 = linear(k3, k4, _HIDDEN, _HIDDEN)
    w3, b3 = linear(k5, k6, _HIDDEN, 1)
    logstd = jnp.zeros((1, 1), jnp.float32)   # nn.Parameter(torch.zeros(1, 1))
    return (w1, b1, w2, b2, w3, b3, logstd)


def _reference_forward(x, params):
    w1, b1, w2, b2, w3, b3, logstd = params
    h1 = jnp.maximum(x @ w1 + b1, 0.0)
    h2 = jnp.maximum(h1 @ w2 + b2, 0.0)
    mean = h2 @ w3 + b3
    return mean, jnp.broadcast_to(logstd, mean.shape)


if __name__ == "__main__":
    key = jax.random.PRNGKey(0)
    k_x, k_p, k_x2, k_x3 = jax.random.split(key, 4)

    batch, input_size = 8, 32
    x = jax.random.normal(k_x, (batch, input_size), jnp.float32)
    params = init_params(k_p, input_size)

    mean, logstd = neural_net_reg_forward(x, params)
    jax.block_until_ready((mean, logstd))

    ref_mean, ref_logstd = _reference_forward(x, params)
    assert mean.shape == (batch, 1) and logstd.shape == (batch, 1)
    assert jnp.allclose(mean, ref_mean, atol=1e-5, rtol=1e-5)
    assert jnp.allclose(logstd, ref_logstd, atol=1e-6, rtol=1e-6)

    # Single grid step with lane padding (B not a multiple of 128).
    mid_batch = 2500
    x_mid = jax.random.normal(k_x2, (mid_batch, input_size), jnp.float32)
    mean_m, logstd_m = neural_net_reg_forward(x_mid, params)
    jax.block_until_ready((mean_m, logstd_m))
    ref_mean_m, ref_logstd_m = _reference_forward(x_mid, params)
    assert mean_m.shape == (mid_batch, 1) and logstd_m.shape == (mid_batch, 1)
    assert jnp.allclose(mean_m, ref_mean_m, atol=1e-4, rtol=1e-4)
    assert jnp.allclose(logstd_m, ref_logstd_m, atol=1e-6, rtol=1e-6)

    # Multi-step grid path (B > _MAX_ROW_TILE -> 2 balanced grid steps).
    big_batch = 9000
    x_big = jax.random.normal(k_x3, (big_batch, input_size), jnp.float32)
    mean_b, logstd_b = neural_net_reg_forward(x_big, params)
    jax.block_until_ready((mean_b, logstd_b))
    ref_mean_b, ref_logstd_b = _reference_forward(x_big, params)
    assert mean_b.shape == (big_batch, 1) and logstd_b.shape == (big_batch, 1)
    assert jnp.allclose(mean_b, ref_mean_b, atol=1e-4, rtol=1e-4)
    assert jnp.allclose(logstd_b, ref_logstd_b, atol=1e-6, rtol=1e-6)

    print("KERNEL_OK")
</pallas_src>

<mosaic_0001>
module attributes {stable_mosaic.version = 11 : i64} {
  func.func @_mlp_kernel(%arg0: i32, %arg1: memref<32x128xf32, #tpu.memory_space<vmem>>, %arg2: memref<64x32xf32, #tpu.memory_space<vmem>>, %arg3: memref<64x1xf32, #tpu.memory_space<vmem>>, %arg4: memref<64x64xf32, #tpu.memory_space<vmem>>, %arg5: memref<64x1xf32, #tpu.memory_space<vmem>>, %arg6: memref<1x64xf32, #tpu.memory_space<vmem>>, %arg7: memref<1x1xf32, #tpu.memory_space<smem>>, %arg8: memref<1x128xf32, #tpu.memory_space<vmem>>) attributes {dimension_semantics = [#tpu.dimension_semantics<parallel>], iteration_bounds = array<i64: 1>, scalar_prefetch = 0 : i64, scratch_operands = 0 : i64, tpu.core_type = #tpu.core_type<tc>, window_params = [{transform_indices = @transform_0, window_bounds = array<i64: 32, 128>}, {pipeline_mode = #tpu.pipeline_mode<synchronous>, transform_indices = @transform_1, window_bounds = array<i64: 64, 32>}, {pipeline_mode = #tpu.pipeline_mode<synchronous>, transform_indices = @transform_2, window_bounds = array<i64: 64, 1>}, {pipeline_mode = #tpu.pipeline_mode<synchronous>, transform_indices = @transform_3, window_bounds = array<i64: 64, 64>}, {pipeline_mode = #tpu.pipeline_mode<synchronous>, transform_indices = @transform_4, window_bounds = array<i64: 64, 1>}, {pipeline_mode = #tpu.pipeline_mode<synchronous>, transform_indices = @transform_5, window_bounds = array<i64: 1, 64>}, {transform_indices = @transform_6, window_bounds = array<i64: 1, 1>}, {transform_indices = @transform_7, window_bounds = array<i64: 1, 128>}]} {
    %c0 = arith.constant 0 : index
    %c0_0 = arith.constant 0 : index
    %0 = vector.load %arg1[%c0, %c0_0] : memref<32x128xf32, #tpu.memory_space<vmem>>, vector<32x128xf32>
    %c0_1 = arith.constant 0 : index
    %c0_2 = arith.constant 0 : index
    %1 = vector.load %arg2[%c0_1, %c0_2] : memref<64x32xf32, #tpu.memory_space<vmem>>, vector<64x32xf32>
    %cst = arith.constant dense<0.000000e+00> : vector<64x128xf32>
    %2 = tpu.matmul %1, %0, %cst {dimension_numbers = #tpu.dot_dimension_numbers<[1], [0], [0], [1], [0, 0, 1, 1], [], []>} : vector<64x32xf32>, vector<32x128xf32>, vector<64x128xf32> -> vector<64x128xf32>
    %c0_3 = arith.constant 0 : index
    %c0_4 = arith.constant 0 : index
    %3 = vector.load %arg3[%c0_3, %c0_4] : memref<64x1xf32, #tpu.memory_space<vmem>>, vector<64x1xf32>
    %4 = vector.broadcast %3 : vector<64x1xf32> to vector<64x128xf32>
    %5 = arith.addf %2, %4 : vector<64x128xf32>
    %cst_5 = arith.constant 0.000000e+00 : f32
    %6 = vector.broadcast %cst_5 : f32 to vector<64x128xf32>
    %7 = arith.maximumf %5, %6 : vector<64x128xf32>
    %c0_6 = arith.constant 0 : index
    %c0_7 = arith.constant 0 : index
    %8 = vector.load %arg4[%c0_6, %c0_7] : memref<64x64xf32, #tpu.memory_space<vmem>>, vector<64x64xf32>
    %cst_8 = arith.constant dense<0.000000e+00> : vector<64x128xf32>
    %9 = tpu.matmul %8, %7, %cst_8 {dimension_numbers = #tpu.dot_dimension_numbers<[1], [0], [0], [1], [0, 0, 1, 1], [], []>} : vector<64x64xf32>, vector<64x128xf32>, vector<64x128xf32> -> vector<64x128xf32>
    %c0_9 = arith.constant 0 : index
    %c0_10 = arith.constant 0 : index
    %10 = vector.load %arg5[%c0_9, %c0_10] : memref<64x1xf32, #tpu.memory_space<vmem>>, vector<64x1xf32>
    %11 = vector.broadcast %10 : vector<64x1xf32> to vector<64x128xf32>
    %12 = arith.addf %9, %11 : vector<64x128xf32>
    %cst_11 = arith.constant 0.000000e+00 : f32
    %13 = vector.broadcast %cst_11 : f32 to vector<64x128xf32>
    %14 = arith.maximumf %12, %13 : vector<64x128xf32>
    %c0_12 = arith.constant 0 : index
    %c0_13 = arith.constant 0 : index
    %15 = vector.load %arg6[%c0_12, %c0_13] : memref<1x64xf32, #tpu.memory_space<vmem>>, vector<1x64xf32>
    %cst_14 = arith.constant dense<0.000000e+00> : vector<1x128xf32>
    %16 = tpu.matmul %15, %14, %cst_14 {dimension_numbers = #tpu.dot_dimension_numbers<[1], [0], [0], [1], [0, 0, 1, 1], [], []>} : vector<1x64xf32>, vector<64x128xf32>, vector<1x128xf32> -> vector<1x128xf32>
    %c0_15 = arith.constant 0 : index
    %c0_16 = arith.constant 0 : index
    %17 = memref.load %arg7[%c0_15, %c0_16] : memref<1x1xf32, #tpu.memory_space<smem>>
    %18 = vector.broadcast %17 : f32 to vector<1x128xf32>
    %19 = arith.addf %16, %18 : vector<1x128xf32>
    %c0_17 = arith.constant 0 : index
    %c0_18 = arith.constant 0 : index
    %20 = vector.load %arg8[%c0_17, %c0_18] : memref<1x128xf32, #tpu.memory_space<vmem>>, vector<1x128xf32>
    tpu.vector_store %arg8[%c0_17, %c0_18], %19 {strides = array<i32>} : memref<1x128xf32, #tpu.memory_space<vmem>>, vector<1x128xf32>,
    return
  }
  func.func @transform_0(%arg0: i32) -> (i32, i32) {
    %c0_i32 = arith.constant 0 : i32
    %c0_i32_0 = arith.constant 0 : i32
    return %c0_i32, %arg0 : i32, i32
  }
  func.func @transform_1(%arg0: i32) -> (i32, i32) {
    %c0_i32 = arith.constant 0 : i32
    %c0_i32_0 = arith.constant 0 : i32
    %c0_i32_1 = arith.constant 0 : i32
    return %c0_i32, %c0_i32_0 : i32, i32
  }
  func.func @transform_2(%arg0: i32) -> (i32, i32) {
    %c0_i32 = arith.constant 0 : i32
    %c0_i32_0 = arith.constant 0 : i32
    %c0_i32_1 = arith.constant 0 : i32
    return %c0_i32, %c0_i32_0 : i32, i32
  }
  func.func @transform_3(%arg0: i32) -> (i32, i32) {
    %c0_i32 = arith.constant 0 : i32
    %c0_i32_0 = arith.constant 0 : i32
    %c0_i32_1 = arith.constant 0 : i32
    return %c0_i32, %c0_i32_0 : i32, i32
  }
  func.func @transform_4(%arg0: i32) -> (i32, i32) {
    %c0_i32 = arith.constant 0 : i32
    %c0_i32_0 = arith.constant 0 : i32
    %c0_i32_1 = arith.constant 0 : i32
    return %c0_i32, %c0_i32_0 : i32, i32
  }
  func.func @transform_5(%arg0: i32) -> (i32, i32) {
    %c0_i32 = arith.constant 0 : i32
    %c0_i32_0 = arith.constant 0 : i32
    %c0_i32_1 = arith.constant 0 : i32
    return %c0_i32, %c0_i32_0 : i32, i32
  }
  func.func @transform_6(%arg0: i32) -> (i32, i32) {
    %c0_i32 = arith.constant 0 : i32
    %c0_i32_0 = arith.constant 0 : i32
    %c0_i32_1 = arith.constant 0 : i32
    return %c0_i32, %c0_i32_0 : i32, i32
  }
  func.func @transform_7(%arg0: i32) -> (i32, i32) {
    %c0_i32 = arith.constant 0 : i32
    %c0_i32_0 = arith.constant 0 : i32
    return %c0_i32, %arg0 : i32, i32
  }
}

</mosaic_0001>

<llo_original>
// kernel: _forward_impl.1
$region0: #{_forward_impl.1}
  #allocation0 [shape = 'u32[]', space=smem, size = 0x4, offset = 0x4, fixed_abs, tag = 'smem constant byte address 0x4 - core index']
  #allocation1 [shape = 'u32[144,128]{1,0:T(1,128)}', space=vmem, size = 0x12000, scoped, tag = 'internal scratch']
  #allocation2 [shape = 'f32[1,1]{1,0:T(1,128)S(6)}', space=smem, size = 0x200, scoped, tag = 'scoped memory for _forward_impl.1']
  %s0 = inlined_call_operand.vmem [shape: f32[32,128], index: 0, kind: input, shape index: {}]
  %s1 = inlined_call_operand.vmem [shape: f32[64,32], index: 1, kind: input, shape index: {}]
  %s2 = inlined_call_operand.vmem [shape: f32[64,1], index: 2, kind: input, shape index: {}]
  %s3 = inlined_call_operand.vmem [shape: f32[64,64], index: 3, kind: input, shape index: {}]
  %s4 = inlined_call_operand.vmem [shape: f32[64,1], index: 4, kind: input, shape index: {}]
  %s5 = inlined_call_operand.vmem [shape: f32[1,64], index: 5, kind: input, shape index: {}]
  %s6 = inlined_call_operand.<no memory space> [shape: f32[1,1], index: 6, kind: input, shape index: {}]
  %s7 = inlined_call_operand.vmem [shape: f32[1,128], index: 7, kind: output, shape index: {}]
  %s8 = sld [smem:[#allocation0]]
  $region38: #{_forward_impl.1} parent=0
    _
  %s10 = ssub.s32 1, %s8
  %s11 = scalar_select 0, %s10, %s8
  %12 = sst [smem:[#allocation2]] %s6
  // Predicated region
  $region2: #{_forward_impl.1} parent=0 // pred_check
    _
  $region3: #{_forward_impl.1} parent=0 // pred_check_branch
    %14 = sbr.rel (0) target = $region5
  $region4: #{_forward_impl.1} parent=0 // pred_region
    _
  $region5: #{_forward_impl.1} parent=0 // pred_fallthru
    _
  // Predicated region
  $region6: #{_forward_impl.1} parent=0 // pred_check
    _
  $region7: #{_forward_impl.1} parent=0 // pred_check_branch
    %16 = sbr.rel (0) target = $region9
  $region8: #{_forward_impl.1} parent=0 // pred_region
    _
  $region9: #{_forward_impl.1} parent=0 // pred_fallthru
    _
  // Predicated region
  $region10: #{_forward_impl.1} parent=0 // pred_check
    _
  $region11: #{_forward_impl.1} parent=0 // pred_check_branch
    %18 = sbr.rel (0) target = $region13
  $region12: #{_forward_impl.1} parent=0 // pred_region
    _
  $region13: #{_forward_impl.1} parent=0 // pred_fallthru
    _
  // Predicated region
  $region14: #{_forward_impl.1} parent=0 // pred_check
    _
  $region15: #{_forward_impl.1} parent=0 // pred_check_branch
    %20 = sbr.rel (0) target = $region17
  $region16: #{_forward_impl.1} parent=0 // pred_region
    _
  $region17: #{_forward_impl.1} parent=0 // pred_fallthru
    _
  // Predicated region
  $region18: #{_forward_impl.1} parent=0 // pred_check
    _
  $region19: #{_forward_impl.1} parent=0 // pred_check_branch
    %22 = sbr.rel (0) target = $region21
  $region20: #{_forward_impl.1} parent=0 // pred_region
    _
  $region21: #{_forward_impl.1} parent=0 // pred_fallthru
    _
  // Predicated region
  $region22: #{_forward_impl.1} parent=0 // pred_check
    _
  $region23: #{_forward_impl.1} parent=0 // pred_check_branch
    %24 = sbr.rel (0) target = $region25
  $region24: #{_forward_impl.1} parent=0 // pred_region
    _
  $region25: #{_forward_impl.1} parent=0 // pred_fallthru
    _
  // Predicated region
  $region26: #{_forward_impl.1} parent=0 // pred_check
    _
  $region27: #{_forward_impl.1} parent=0 // pred_check_branch
    %26 = sbr.rel (0) target = $region29
  $region28: #{_forward_impl.1} parent=0 // pred_region
    _
  $region29: #{_forward_impl.1} parent=0 // pred_fallthru
    _
  %v27 = vld [vmem:[%s0] sm:$0xff]
  %v28 = vld [vmem:[%s0 + $0x8] sm:$0xff]
  %v29 = vld [vmem:[%s0 + $0x10] sm:$0xff]
  %v30 = vld [vmem:[%s0 + $0x18] sm:$0xff]
  %v31 = vld [vmem:[%s1] sm:$0xff]
  %v32 = vld [vmem:[%s1 + $0x8] sm:$0xff]
  %v33 = vld [vmem:[%s1 + $0x10] sm:$0xff]
  %v34 = vld [vmem:[%s1 + $0x18] sm:$0xff]
  %v35 = vld [vmem:[%s1 + $0x20] sm:$0xff]
  %v36 = vld [vmem:[%s1 + $0x28] sm:$0xff]
  %v37 = vld [vmem:[%s1 + $0x30] sm:$0xff]
  %v38 = vld [vmem:[%s1 + $0x38] sm:$0xff]
  %v39 = vld [vmem:[%s2] sm:$0xff]
  %v40 = vld [vmem:[%s2 + $0x8] sm:$0xff]
  %v41 = vld [vmem:[%s2 + $0x10] sm:$0xff]
  %v42 = vld [vmem:[%s2 + $0x18] sm:$0xff]
  %v43 = vld [vmem:[%s2 + $0x20] sm:$0xff]
  %v44 = vld [vmem:[%s2 + $0x28] sm:$0xff]
  %v45 = vld [vmem:[%s2 + $0x30] sm:$0xff]
  %v46 = vld [vmem:[%s2 + $0x38] sm:$0xff]
  %48 = vset.pattern.permute.xlu0 0
  %49 = vperm.xlu0 %48, %v39
  %v50 = vpop.permute.xlu0 %49
  %53 = vset.pattern.permute.xlu0 0
  %54 = vperm.xlu0 %53, %v40
  %v55 = vpop.permute.xlu0 %54
  %58 = vset.pattern.permute.xlu0 0
  %59 = vperm.xlu0 %58, %v41
  %v60 = vpop.permute.xlu0 %59
  %63 = vset.pattern.permute.xlu0 0
  %64 = vperm.xlu0 %63, %v42
  %v65 = vpop.permute.xlu0 %64
  %68 = vset.pattern.permute.xlu0 0
  %69 = vperm.xlu0 %68, %v43
  %v70 = vpop.permute.xlu0 %69
  %73 = vset.pattern.permute.xlu0 0
  %74 = vperm.xlu0 %73, %v44
  %v75 = vpop.permute.xlu0 %74
  %78 = vset.pattern.permute.xlu0 0
  %79 = vperm.xlu0 %78, %v45
  %v80 = vpop.permute.xlu0 %79
  %83 = vset.pattern.permute.xlu0 0
  %84 = vperm.xlu0 %83, %v46
  %v85 = vpop.permute.xlu0 %84
  %vm87 = vcmask 261120
  %v89 = vsel %vm87, %v31, 0
  %v92 = vsel %vm87, %v32, 0
  %v95 = vsel %vm87, %v33, 0
  %v98 = vsel %vm87, %v34, 0
  %v101 = vsel %vm87, %v35, 0
  %v104 = vsel %vm87, %v36, 0
  %v107 = vsel %vm87, %v37, 0
  %v110 = vsel %vm87, %v38, 0
  %112 = vmatprep.subr.mxu0 0.0
  %113 = vmatpush1.msra.mxu0 0.0
  %114 = vmatprep.subr.mxu0 0.0
  %115 = vmatpush1.msra.mxu0 0.0
  %116 = vmatprep.subr.mxu0 0.0
  %117 = vmatpush1.msra.mxu0 0.0
  %118 = vmatprep.subr.mxu0 0.0
  %119 = vmatpush1.msra.mxu0 0.0
  %120 = vmatprep.subr.mxu0 0.0
  %121 = vmatpush1.msra.mxu0 0.0
  %122 = vmatprep.subr.mxu0 0.0
  %123 = vmatpush1.msra.mxu0 0.0
  %124 = vmatprep.subr.mxu0 0.0
  %125 = vmatpush1.msra.mxu0 0.0
  %126 = vmatprep.subr.mxu0 0.0
  %127 = vmatpush1.msra.mxu0 0.0
  %128 = vmatprep.subr.mxu0 0.0
  %129 = vmatpush1.msra.mxu0 0.0
  %130 = vmatprep.subr.mxu0 0.0
  %131 = vmatpush1.msra.mxu0 0.0
  %132 = vmatprep.subr.mxu0 0.0
  %133 = vmatpush1.msra.mxu0 0.0
  %134 = vmatprep.subr.mxu0 0.0
  %135 = vmatpush1.msra.mxu0 0.0
  %136 = vmatprep.subr.mxu0 0.0
  %137 = vmatpush1.msra.mxu0 %v30
  %138 = vmatprep.subr.mxu0 0.0
  %139 = vmatpush1.msra.mxu0 %v29
  %140 = vmatprep.subr.mxu0 0.0
  %141 = vmatpush1.msra.mxu0 %v28
  %142 = vmatprep.subr.mxu0 0.0
  %143 = vmatpush1.msra.mxu0 %v27
  %144 = vmatprep.subr.mxu0 0.0
  %145 = vmatpush2.msra.mxu0 0.0
  %146 = vmatprep.subr.mxu0 0.0
  %147 = vmatpush2.msra.mxu0 0.0
  %148 = vmatprep.subr.mxu0 0.0
  %149 = vmatpush2.msra.mxu0 0.0
  %150 = vmatprep.subr.mxu0 0.0
  %151 = vmatpush2.msra.mxu0 0.0
  %152 = vmatprep.subr.mxu0 0.0
  %153 = vmatpush2.msra.mxu0 0.0
  %154 = vmatprep.subr.mxu0 0.0
  %155 = vmatpush2.msra.mxu0 0.0
  %156 = vmatprep.subr.mxu0 0.0
  %157 = vmatpush2.msra.mxu0 0.0
  %158 = vmatprep.subr.mxu0 0.0
  %159 = vmatpush2.msra.mxu0 0.0
  %160 = vmatprep.subr.mxu0 0.0
  %161 = vmatpush2.msra.mxu0 0.0
  %162 = vmatprep.subr.mxu0 0.0
  %163 = vmatpush2.msra.mxu0 0.0
  %164 = vmatprep.subr.mxu0 0.0
  %165 = vmatpush2.msra.mxu0 0.0
  %166 = vmatprep.subr.mxu0 0.0
  %167 = vmatpush2.msra.mxu0 0.0
  %168 = vmatprep.subr.mxu0 0.0
  %169 = vmatpush2.msra.mxu0 0.0
  %170 = vmatprep.subr.mxu0 0.0
  %171 = vmatpush2.msra.mxu0 0.0
  %172 = vmatprep.subr.mxu0 0.0
  %173 = vmatpush2.msra.mxu0 0.0
  %174 = vmatprep.subr.mxu0 0.0
  %175 = vmatpush2.msra.mxu0 0.0
  %176 = vmatprep.mubr.f32.mxu0 0.0
  %177 = vmatmul.mubr.f32.gmra.mxu0 %v89
  %v178 = vpop.f32.mrf.mxu0
  %v179 = vadd.f32 %v50, %v178
  %v180 = vpop.f32.mrf.mxu0
  %181 = vmatprep.mubr.f32.mxu0 0.0
  %182 = vmatmul.mubr.f32.gmra.mxu0 %v92
  %v183 = vpop.f32.mrf.mxu0
  %v184 = vadd.f32 %v55, %v183
  %v185 = vpop.f32.mrf.mxu0
  %186 = vmatprep.mubr.f32.mxu0 0.0
  %187 = vmatmul.mubr.f32.gmra.mxu0 %v95
  %v188 = vpop.f32.mrf.mxu0
  %v189 = vadd.f32 %v60, %v188
  %v190 = vpop.f32.mrf.mxu0
  %191 = vmatprep.mubr.f32.mxu0 0.0
  %192 = vmatmul.mubr.f32.gmra.mxu0 %v98
  %v193 = vpop.f32.mrf.mxu0
  %v194 = vadd.f32 %v65, %v193
  %v195 = vpop.f32.mrf.mxu0
  %196 = vmatprep.mubr.f32.mxu0 0.0
  %197 = vmatmul.mubr.f32.gmra.mxu0 %v101
  %v198 = vpop.f32.mrf.mxu0
  %v199 = vadd.f32 %v70, %v198
  %v200 = vpop.f32.mrf.mxu0
  %201 = vmatprep.mubr.f32.mxu0 0.0
  %202 = vmatmul.mubr.f32.gmra.mxu0 %v104
  %v203 = vpop.f32.mrf.mxu0
  %v204 = vadd.f32 %v75, %v203
  %v205 = vpop.f32.mrf.mxu0
  %206 = vmatprep.mubr.f32.mxu0 0.0
  %207 = vmatmul.mubr.f32.gmra.mxu0 %v107
  %v208 = vpop.f32.mrf.mxu0
  %v209 = vadd.f32 %v80, %v208
  %v210 = vpop.f32.mrf.mxu0
  %211 = vmatprep.mubr.f32.mxu0 0.0
  %212 = vmatmul.mubr.f32.gmra.mxu0 %v110
  %v213 = vpop.f32.mrf.mxu0
  %v214 = vadd.f32 %v85, %v213
  %v215 = vpop.f32.mrf.mxu0
  %216 = vdwg.mxu0
  %v217 = vmax.f32 %v179, 0.0
  %v218 = vmax.f32 %v184, 0.0
  %v219 = vmax.f32 %v189, 0.0
  %v220 = vmax.f32 %v194, 0.0
  %v221 = vmax.f32 %v199, 0.0
  %v222 = vmax.f32 %v204, 0.0
  %v223 = vmax.f32 %v209, 0.0
  %v224 = vmax.f32 %v214, 0.0
  %v225 = vld [vmem:[%s3] sm:$0xff]
  %v226 = vld [vmem:[%s3 + $0x8] sm:$0xff]
  %v227 = vld [vmem:[%s3 + $0x10] sm:$0xff]
  %v228 = vld [vmem:[%s3 + $0x18] sm:$0xff]
  %v229 = vld [vmem:[%s3 + $0x20] sm:$0xff]
  %v230 = vld [vmem:[%s3 + $0x28] sm:$0xff]
  %v231 = vld [vmem:[%s3 + $0x30] sm:$0xff]
  %v232 = vld [vmem:[%s3 + $0x38] sm:$0xff]
  %v233 = vld [vmem:[%s4] sm:$0xff]
  %v234 = vld [vmem:[%s4 + $0x8] sm:$0xff]
  %v235 = vld [vmem:[%s4 + $0x10] sm:$0xff]
  %v236 = vld [vmem:[%s4 + $0x18] sm:$0xff]
  %v237 = vld [vmem:[%s4 + $0x20] sm:$0xff]
  %v238 = vld [vmem:[%s4 + $0x28] sm:$0xff]
  %v239 = vld [vmem:[%s4 + $0x30] sm:$0xff]
  %v240 = vld [vmem:[%s4 + $0x38] sm:$0xff]
  %242 = vset.pattern.permute.xlu0 0
  %243 = vperm.xlu0 %242, %v233
  %v244 = vpop.permute.xlu0 %243
  %247 = vset.pattern.permute.xlu0 0
  %248 = vperm.xlu0 %247, %v234
  %v249 = vpop.permute.xlu0 %248
  %252 = vset.pattern.permute.xlu0 0
  %253 = vperm.xlu0 %252, %v235
  %v254 = vpop.permute.xlu0 %253
  %257 = vset.pattern.permute.xlu0 0
  %258 = vperm.xlu0 %257, %v236
  %v259 = vpop.permute.xlu0 %258
  %262 = vset.pattern.permute.xlu0 0
  %263 = vperm.xlu0 %262, %v237
  %v264 = vpop.permute.xlu0 %263
  %267 = vset.pattern.permute.xlu0 0
  %268 = vperm.xlu0 %267, %v238
  %v269 = vpop.permute.xlu0 %268
  %272 = vset.pattern.permute.xlu0 0
  %273 = vperm.xlu0 %272, %v239
  %v274 = vpop.permute.xlu0 %273
  %277 = vset.pattern.permute.xlu0 0
  %278 = vperm.xlu0 %277, %v240
  %v279 = vpop.permute.xlu0 %278
  %vm281 = vcmask 523264
  %v283 = vsel %vm281, %v225, 0
  %v286 = vsel %vm281, %v226, 0
  %v289 = vsel %vm281, %v227, 0
  %v292 = vsel %vm281, %v228, 0
  %v295 = vsel %vm281, %v229, 0
  %v298 = vsel %vm281, %v230, 0
  %v301 = vsel %vm281, %v231, 0
  %v304 = vsel %vm281, %v232, 0
  %306 = vmatprep.subr.mxu0 0.0
  %307 = vmatpush1.msra.mxu0 0.0
  %308 = vmatprep.subr.mxu0 0.0
  %309 = vmatpush1.msra.mxu0 0.0
  %310 = vmatprep.subr.mxu0 0.0
  %311 = vmatpush1.msra.mxu0 0.0
  %312 = vmatprep.subr.mxu0 0.0
  %313 = vmatpush1.msra.mxu0 0.0
  %314 = vmatprep.subr.mxu0 0.0
  %315 = vmatpush1.msra.mxu0 0.0
  %316 = vmatprep.subr.mxu0 0.0
  %317 = vmatpush1.msra.mxu0 0.0
  %318 = vmatprep.subr.mxu0 0.0
  %319 = vmatpush1.msra.mxu0 0.0
  %320 = vmatprep.subr.mxu0 0.0
  %321 = vmatpush1.msra.mxu0 0.0
  %322 = vmatprep.subr.mxu0 0.0
  %323 = vmatpush1.msra.mxu0 %v224
  %324 = vmatprep.subr.mxu0 0.0
  %325 = vmatpush1.msra.mxu0 %v223
  %326 = vmatprep.subr.mxu0 0.0
  %327 = vmatpush1.msra.mxu0 %v222
  %328 = vmatprep.subr.mxu0 0.0
  %329 = vmatpush1.msra.mxu0 %v221
  %330 = vmatprep.subr.mxu0 0.0
  %331 = vmatpush1.msra.mxu0 %v220
  %332 = vmatprep.subr.mxu0 0.0
  %333 = vmatpush1.msra.mxu0 %v219
  %334 = vmatprep.subr.mxu0 0.0
  %335 = vmatpush1.msra.mxu0 %v218
  %336 = vmatprep.subr.mxu0 0.0
  %337 = vmatpush1.msra.mxu0 %v217
  %338 = vmatprep.subr.mxu0 0.0
  %339 = vmatpush2.msra.mxu0 0.0
  %340 = vmatprep.subr.mxu0 0.0
  %341 = vmatpush2.msra.mxu0 0.0
  %342 = vmatprep.subr.mxu0 0.0
  %343 = vmatpush2.msra.mxu0 0.0
  %344 = vmatprep.subr.mxu0 0.0
  %345 = vmatpush2.msra.mxu0 0.0
  %346 = vmatprep.subr.mxu0 0.0
  %347 = vmatpush2.msra.mxu0 0.0
  %348 = vmatprep.subr.mxu0 0.0
  %349 = vmatpush2.msra.mxu0 0.0
  %350 = vmatprep.subr.mxu0 0.0
  %351 = vmatpush2.msra.mxu0 0.0
  %352 = vmatprep.subr.mxu0 0.0
  %353 = vmatpush2.msra.mxu0 0.0
  %354 = vmatprep.subr.mxu0 0.0
  %355 = vmatpush2.msra.mxu0 0.0
  %356 = vmatprep.subr.mxu0 0.0
  %357 = vmatpush2.msra.mxu0 0.0
  %358 = vmatprep.subr.mxu0 0.0
  %359 = vmatpush2.msra.mxu0 0.0
  %360 = vmatprep.subr.mxu0 0.0
  %361 = vmatpush2.msra.mxu0 0.0
  %362 = vmatprep.subr.mxu0 0.0
  %363 = vmatpush2.msra.mxu0 0.0
  %364 = vmatprep.subr.mxu0 0.0
  %365 = vmatpush2.msra.mxu0 0.0
  %366 = vmatprep.subr.mxu0 0.0
  %367 = vmatpush2.msra.mxu0 0.0
  %368 = vmatprep.subr.mxu0 0.0
  %369 = vmatpush2.msra.mxu0 0.0
  %370 = vmatprep.mubr.f32.mxu0 0.0
  %371 = vmatmul.mubr.f32.gmra.mxu0 %v283
  %v372 = vpop.f32.mrf.mxu0
  %v373 = vadd.f32 %v244, %v372
  %v374 = vpop.f32.mrf.mxu0
  %375 = vmatprep.mubr.f32.mxu0 0.0
  %376 = vmatmul.mubr.f32.gmra.mxu0 %v286
  %v377 = vpop.f32.mrf.mxu0
  %v378 = vadd.f32 %v249, %v377
  %v379 = vpop.f32.mrf.mxu0
  %380 = vmatprep.mubr.f32.mxu0 0.0
  %381 = vmatmul.mubr.f32.gmra.mxu0 %v289
  %v382 = vpop.f32.mrf.mxu0
  %v383 = vadd.f32 %v254, %v382
  %v384 = vpop.f32.mrf.mxu0
  %385 = vmatprep.mubr.f32.mxu0 0.0
  %386 = vmatmul.mubr.f32.gmra.mxu0 %v292
  %v387 = vpop.f32.mrf.mxu0
  %v388 = vadd.f32 %v259, %v387
  %v389 = vpop.f32.mrf.mxu0
  %390 = vmatprep.mubr.f32.mxu0 0.0
  %391 = vmatmul.mubr.f32.gmra.mxu0 %v295
  %v392 = vpop.f32.mrf.mxu0
  %v393 = vadd.f32 %v264, %v392
  %v394 = vpop.f32.mrf.mxu0
  %395 = vmatprep.mubr.f32.mxu0 0.0
  %396 = vmatmul.mubr.f32.gmra.mxu0 %v298
  %v397 = vpop.f32.mrf.mxu0
  %v398 = vadd.f32 %v269, %v397
  %v399 = vpop.f32.mrf.mxu0
  %400 = vmatprep.mubr.f32.mxu0 0.0
  %401 = vmatmul.mubr.f32.gmra.mxu0 %v301
  %v402 = vpop.f32.mrf.mxu0
  %v403 = vadd.f32 %v274, %v402
  %v404 = vpop.f32.mrf.mxu0
  %405 = vmatprep.mubr.f32.mxu0 0.0
  %406 = vmatmul.mubr.f32.gmra.mxu0 %v304
  %v407 = vpop.f32.mrf.mxu0
  %v408 = vadd.f32 %v279, %v407
  %v409 = vpop.f32.mrf.mxu0
  %410 = vdwg.mxu0
  %v411 = vmax.f32 %v373, 0.0
  %v412 = vmax.f32 %v378, 0.0
  %v413 = vmax.f32 %v383, 0.0
  %v414 = vmax.f32 %v388, 0.0
  %v415 = vmax.f32 %v393, 0.0
  %v416 = vmax.f32 %v398, 0.0
  %v417 = vmax.f32 %v403, 0.0
  %v418 = vmax.f32 %v408, 0.0
  %v419 = vld [vmem:[%s5] sm:$0x1]
  %s420 = sld [smem:[#allocation2]]
  %v421 = vstv %s420
  %v423 = vsel %vm281, %v419, 0
  %425 = vmatprep.subr.mxu0 0.0
  %426 = vmatpush1.msra.mxu0 0.0
  %427 = vmatprep.subr.mxu0 0.0
  %428 = vmatpush1.msra.mxu0 0.0
  %429 = vmatprep.subr.mxu0 0.0
  %430 = vmatpush1.msra.mxu0 0.0
  %431 = vmatprep.subr.mxu0 0.0
  %432 = vmatpush1.msra.mxu0 0.0
  %433 = vmatprep.subr.mxu0 0.0
  %434 = vmatpush1.msra.mxu0 0.0
  %435 = vmatprep.subr.mxu0 0.0
  %436 = vmatpush1.msra.mxu0 0.0
  %437 = vmatprep.subr.mxu0 0.0
  %438 = vmatpush1.msra.mxu0 0.0
  %439 = vmatprep.subr.mxu0 0.0
  %440 = vmatpush1.msra.mxu0 0.0
  %441 = vmatprep.subr.mxu0 0.0
  %442 = vmatpush1.msra.mxu0 %v418
  %443 = vmatprep.subr.mxu0 0.0
  %444 = vmatpush1.msra.mxu0 %v417
  %445 = vmatprep.subr.mxu0 0.0
  %446 = vmatpush1.msra.mxu0 %v416
  %447 = vmatprep.subr.mxu0 0.0
  %448 = vmatpush1.msra.mxu0 %v415
  %449 = vmatprep.subr.mxu0 0.0
  %450 = vmatpush1.msra.mxu0 %v414
  %451 = vmatprep.subr.mxu0 0.0
  %452 = vmatpush1.msra.mxu0 %v413
  %453 = vmatprep.subr.mxu0 0.0
  %454 = vmatpush1.msra.mxu0 %v412
  %455 = vmatprep.subr.mxu0 0.0
  %456 = vmatpush1.msra.mxu0 %v411
  %457 = vmatprep.subr.mxu0 0.0
  %458 = vmatpush2.msra.mxu0 0.0
  %459 = vmatprep.subr.mxu0 0.0
  %460 = vmatpush2.msra.mxu0 0.0
  %461 = vmatprep.subr.mxu0 0.0
  %462 = vmatpush2.msra.mxu0 0.0
  %463 = vmatprep.subr.mxu0 0.0
  %464 = vmatpush2.msra.mxu0 0.0
  %465 = vmatprep.subr.mxu0 0.0
  %466 = vmatpush2.msra.mxu0 0.0
  %467 = vmatprep.subr.mxu0 0.0
  %468 = vmatpush2.msra.mxu0 0.0
  %469 = vmatprep.subr.mxu0 0.0
  %470 = vmatpush2.msra.mxu0 0.0
  %471 = vmatprep.subr.mxu0 0.0
  %472 = vmatpush2.msra.mxu0 0.0
  %473 = vmatprep.subr.mxu0 0.0
  %474 = vmatpush2.msra.mxu0 0.0
  %475 = vmatprep.subr.mxu0 0.0
  %476 = vmatpush2.msra.mxu0 0.0
  %477 = vmatprep.subr.mxu0 0.0
  %478 = vmatpush2.msra.mxu0 0.0
  %479 = vmatprep.subr.mxu0 0.0
  %480 = vmatpush2.msra.mxu0 0.0
  %481 = vmatprep.subr.mxu0 0.0
  %482 = vmatpush2.msra.mxu0 0.0
  %483 = vmatprep.subr.mxu0 0.0
  %484 = vmatpush2.msra.mxu0 0.0
  %485 = vmatprep.subr.mxu0 0.0
  %486 = vmatpush2.msra.mxu0 0.0
  %487 = vmatprep.subr.mxu0 0.0
  %488 = vmatpush2.msra.mxu0 0.0
  %489 = vmatprep.mubr.f32.mxu0 0.0
  %490 = vmatmul.mubr.f32.gmra.mxu0 %v423
  %v491 = vpop.f32.mrf.mxu0
  %v492 = vadd.f32 %v421, %v491
  %v493 = vpop.f32.mrf.mxu0
  %494 = vdwg.mxu0
  %495 = vst [vmem:[%s7] sm:$0x1] %v492
  // Predicated region
  $region30: #{_forward_impl.1} parent=0 // pred_check
    _
  $region31: #{_forward_impl.1} parent=0 // pred_check_branch
    %497 = sbr.rel (0) target = $region33
  $region32: #{_forward_impl.1} parent=0 // pred_region
    _
  $region33: #{_forward_impl.1} parent=0 // pred_fallthru
    _
  // Predicated region
  $region34: #{_forward_impl.1} parent=0 // pred_check
    _
  $region35: #{_forward_impl.1} parent=0 // pred_check_branch
    %499 = sbr.rel (0) target = $region37
  $region36: #{_forward_impl.1} parent=0 // pred_region
    _
  $region37: #{_forward_impl.1} parent=0 // pred_fallthru
    _

</llo_original>
